<compile_context>
chip_gen: v7x
topology: tpu7x:2x2x1
jax: 0.10.0
libtpu: 0.0.40
codegen_flags: <defaults>
</compile_context>

<pallas_src>
import jax
import jax.numpy as jnp
from jax.experimental import pallas as pl
from jax.experimental.pallas import tpu as pltpu


def _round_up(a, m):
    return ((a + m - 1) // m) * m


def _attention_kernel(x_ref, w1_ref, b1_ref, w2_ref, b2_ref, fbar_ref, alphas_ref):
    """One grid step processes a block of TB fused-batch rows.

    x_ref:      (TB, R, D)  input features (block of the fused batch axis), VMEM
    w1_ref:     (D, D)      linear1 weight, transposed to (in -> out), VMEM
    b1_ref:     (1, D)      linear1 bias, VMEM
    w2_ref:     (1, D)      linear2 weight row (D_out = 1), VMEM
    b2_ref:     (1, 1)      linear2 bias, SMEM scalar
    fbar_ref:   (TB, D)     attention-pooled features (lane-major, 8 rows / vreg store)
    alphas_ref: (TB, R)     attention weights (lane-dense 2D block)
    """
    TB, R, D = x_ref.shape

    # ---- F.normalize(x, dim=-1) in f32; rsqrt issues on the EUP ----
    x3 = x_ref[...].astype(jnp.float32)                          # (TB, R, D)
    sumsq = jnp.sum(x3 * x3, axis=-1, keepdims=True)             # (TB, R, 1)
    xn3 = x3 * jax.lax.rsqrt(jnp.maximum(sumsq, 1e-24))          # == x / max(||x||, 1e-12)

    # ---- linear1 + tanh: ONE MXU matmul for the whole block ----
    xn2 = xn3.reshape(TB * R, D)                                 # leading-dim merge (free)
    h = jnp.tanh(
        jnp.dot(xn2.astype(w1_ref.dtype), w1_ref[...],
                preferred_element_type=jnp.float32)
        + b1_ref[...].astype(jnp.float32)                        # read once per grid step
    )                                                            # (TB*R, D) f32

    # ---- linear2 (D_out = 1): elementwise mul + lane reduce; b2 is an SMEM scalar ----
    hw3 = (h * w2_ref[...].astype(jnp.float32)).reshape(TB, R, D)
    logits = jnp.sum(hw3, axis=-1, keepdims=True) + b2_ref[0, 0].astype(jnp.float32)
    # logits: (TB, R, 1)

    # ---- softmax over R for the whole tile ----
    m = jnp.max(logits, axis=1, keepdims=True)                   # (TB, 1, 1)
    e = jnp.exp(logits - m)                                      # (TB, R, 1)
    denom = jnp.sum(e, axis=1, keepdims=True)                    # (TB, 1, 1)
    # approx reciprocal runs on the EUP; rows sum to 1 only to ~1e-3 rel. accuracy.
    alphas3 = e * pl.reciprocal(denom, approx=True)              # (TB, R, 1)

    # ---- fbar = einsum('br,brd->bd', alphas, x_normalized) ----
    fbar = jnp.sum(alphas3 * xn3, axis=1)                        # (TB, D) lane-major
    fbar_ref[...] = fbar.astype(fbar_ref.dtype)

    # ---- alphas: relayout (TB, R, 1) sublane-major -> (TB, R) lane-major ----
    # Identity-mask + axis=1 reduce: exactly the broadcast / sublane-reduce pattern used
    # for fbar above (known to lower), so the output block can be lane-dense (bb, R)
    # instead of the 128x-wasteful (bb, R, 1).  Tiny (TB, R, R) temp; R is small.
    eye = (jax.lax.broadcasted_iota(jnp.int32, (R, R), 0)
           == jax.lax.broadcasted_iota(jnp.int32, (R, R), 1)).astype(jnp.float32)
    alphas2d = jnp.sum(alphas3 * eye[None, :, :], axis=1)        # (TB, R), exact copy
    alphas_ref[...] = alphas2d.astype(alphas_ref.dtype)


def attention_model_forward(x, w1, b1, w2, b2, *, block_b=1024,
                            vmem_limit_bytes=48 * 1024 * 1024):
    """x: (batch, n, R, D_in); torch-convention params:
       w1 (D_in, D_in), b1 (D_in,), w2 (D_out=1, D_in), b2 (1,).

    block_b / vmem_limit_bytes defaults fit all of v5e/v6e/v7x (v7x: 64 MiB physical
    VMEM -> 48 MiB scoped leaves headroom; on v6e you may push block_b to ~2048 with a
    higher limit).
    """
    b, n, r, d = x.shape
    B = b * n
    xf = x.reshape(B, r, d)

    # ---- block sizing: as large as the VMEM budget allows, but keep >= 2 grid steps ----
    itemsize = jnp.dtype(x.dtype).itemsize
    d_pad = _round_up(d, 128)           # lane padding of the feature dim
    r_pad8 = _round_up(r, 8)            # sublane padding of the region dim
    r_pad128 = _round_up(r, 128)        # lane padding when R sits on lanes (alphas out)
    bytes_per_row = (
        2 * r_pad8 * d_pad * itemsize           # x double-buffered pipeline input
        + 4 * r_pad8 * d_pad * 4                # f32 intermediates (x3/xn3/h/hw3)
        + r_pad8 * r_pad128 * 4                 # identity-relayout temp (TB, R, R)
        + (2 * d_pad * 4 + 2 * r_pad128 * 4 + 7) // 8   # fbar/alphas output buffers
    )
    vmem_cap = max(8, (int(0.75 * vmem_limit_bytes) // bytes_per_row) // 8 * 8)
    two_step_cap = _round_up(max(-(-B // 2), 1), 8)   # keep grid >= 2 when B allows
    bb = max(8, min(_round_up(block_b, 8), vmem_cap, two_step_cap))

    B_pad = _round_up(B, bb)
    if B_pad != B:
        xf = jnp.pad(xf, ((0, B_pad - B), (0, 0), (0, 0)))
    grid = (B_pad // bb,)

    cost = pl.CostEstimate(
        flops=2 * B_pad * r * d * d + 8 * B_pad * r * d,
        transcendentals=B_pad * r * (d + 2) + B_pad,
        bytes_accessed=(B_pad * r * d + B_pad * d + B_pad * r) * int(itemsize)
                       + (d * d + 2 * d + 1) * 4,
    )

    fbar, alphas = pl.pallas_call(
        _attention_kernel,
        out_shape=(
            jax.ShapeDtypeStruct((B_pad, d), x.dtype),
            jax.ShapeDtypeStruct((B_pad, r), x.dtype),
        ),
        grid=grid,
        in_specs=[
            pl.BlockSpec((bb, r, d), lambda i: (i, 0, 0)),          # x block
            pl.BlockSpec((d, d), lambda i: (0, 0)),                 # w1 (fetched once)
            pl.BlockSpec((1, d), lambda i: (0, 0)),                 # b1
            pl.BlockSpec((1, d), lambda i: (0, 0)),                 # w2 row
            pl.BlockSpec(memory_space=pltpu.MemorySpace.SMEM),      # b2 scalar in SMEM
        ],
        out_specs=(
            pl.BlockSpec((bb, d), lambda i: (i, 0)),                # fbar (lane-major)
            pl.BlockSpec((bb, r), lambda i: (i, 0)),                # alphas (lane-dense)
        ),
        compiler_params=pltpu.CompilerParams(
            dimension_semantics=("parallel",),        # shard batch across v7x cores
            vmem_limit_bytes=vmem_limit_bytes,        # raise scoped VMEM for big blocks
        ),
        cost_estimate=cost,
    )(xf, w1.T, b1.reshape(1, d), w2.reshape(1, d), b2.reshape(1, 1))

    fbar = fbar[:B].reshape(b, n, d)
    alphas = alphas[:B].reshape(b, n, r)
    return fbar, alphas


def _reference_forward(x, w1, b1, w2, b2):
    """Pure-JAX mirror of the PyTorch forward (is_att=True, normalize_F=True)."""
    nrm = jnp.sqrt(jnp.sum(x * x, axis=-1, keepdims=True))
    xn = x / jnp.maximum(nrm, 1e-12)
    h = jnp.tanh(xn @ w1.T + b1)
    out = (h @ w2.T + b2)[..., 0]
    alphas = jax.nn.softmax(out, axis=2)
    fbar = jnp.einsum("bnr,bnrd->bnd", alphas, xn)
    return fbar, alphas


if __name__ == "__main__":
    # Small shapes consistent with the module: x = (batch, n, R, D_in)
    batch, n, R, D_in, D_out = 2, 8, 8, 32, 1

    key = jax.random.PRNGKey(0)
    kx, k1, k2, k3, k4 = jax.random.split(key, 5)

    x = jax.random.normal(kx, (batch, n, R, D_in), dtype=jnp.float32)

    # torch nn.Linear default init: U(-1/sqrt(fan_in), 1/sqrt(fan_in))
    bound = 1.0 / (D_in ** 0.5)
    w1 = jax.random.uniform(k1, (D_in, D_in), minval=-bound, maxval=bound, dtype=jnp.float32)
    b1 = jax.random.uniform(k2, (D_in,), minval=-bound, maxval=bound, dtype=jnp.float32)
    w2 = jax.random.uniform(k3, (D_out, D_in), minval=-bound, maxval=bound, dtype=jnp.float32)
    b2 = jax.random.uniform(k4, (D_out,), minval=-bound, maxval=bound, dtype=jnp.float32)

    # Fused batch B=16 -> the >=2-grid-step cap yields bb=8, a 2-step pipelined grid.
    fbar, alphas = attention_model_forward(x, w1, b1, w2, b2)
    jax.block_until_ready((fbar, alphas))

    fbar_r, alphas_r = _reference_forward(x, w1, b1, w2, b2)
    assert fbar.shape == (batch, n, D_in) and alphas.shape == (batch, n, R)
    assert jnp.allclose(fbar, fbar_r, atol=2e-3, rtol=2e-3)
    assert jnp.allclose(alphas, alphas_r, atol=2e-3, rtol=2e-3)

    print("KERNEL_OK")
</pallas_src>

<mosaic_0001>
module attributes {stable_mosaic.version = 11 : i64} {
  func.func @_attention_kernel(%arg0: i32, %arg1: memref<8x8x32xf32, #tpu.memory_space<vmem>>, %arg2: memref<32x32xf32, #tpu.memory_space<vmem>>, %arg3: memref<1x32xf32, #tpu.memory_space<vmem>>, %arg4: memref<1x32xf32, #tpu.memory_space<vmem>>, %arg5: memref<1x1xf32, #tpu.memory_space<smem>>, %arg6: memref<8x32xf32, #tpu.memory_space<vmem>>, %arg7: memref<8x8xf32, #tpu.memory_space<vmem>>) attributes {dimension_semantics = [#tpu.dimension_semantics<parallel>], iteration_bounds = array<i64: 2>, scalar_prefetch = 0 : i64, scratch_operands = 0 : i64, tpu.core_type = #tpu.core_type<tc>, window_params = [{transform_indices = @transform_0, window_bounds = array<i64: 8, 8, 32>}, {pipeline_mode = #tpu.pipeline_mode<synchronous>, transform_indices = @transform_1, window_bounds = array<i64: 32, 32>}, {pipeline_mode = #tpu.pipeline_mode<synchronous>, transform_indices = @transform_2, window_bounds = array<i64: 1, 32>}, {pipeline_mode = #tpu.pipeline_mode<synchronous>, transform_indices = @transform_3, window_bounds = array<i64: 1, 32>}, {transform_indices = @transform_4, window_bounds = array<i64: 1, 1>}, {transform_indices = @transform_5, window_bounds = array<i64: 8, 32>}, {transform_indices = @transform_6, window_bounds = array<i64: 8, 8>}]} {
    %c0 = arith.constant 0 : index
    %c0_0 = arith.constant 0 : index
    %c0_1 = arith.constant 0 : index
    %0 = vector.load %arg1[%c0, %c0_0, %c0_1] : memref<8x8x32xf32, #tpu.memory_space<vmem>>, vector<8x8x32xf32>
    %1 = arith.mulf %0, %0 : vector<8x8x32xf32>
    %cst = arith.constant dense<0.000000e+00> : vector<8x8xf32>
    %2 = vector.multi_reduction <add>, %1, %cst [2] : vector<8x8x32xf32> to vector<8x8xf32>
    %3 = vector.shape_cast %2 : vector<8x8xf32> to vector<8x8x1xf32>
    %cst_2 = arith.constant 1.000000e-24 : f32
    %4 = vector.broadcast %cst_2 : f32 to vector<8x8x1xf32>
    %5 = arith.maximumf %3, %4 : vector<8x8x1xf32>
    %6 = math.rsqrt %5 : vector<8x8x1xf32>
    %7 = vector.broadcast %6 : vector<8x8x1xf32> to vector<8x8x32xf32>
    %8 = arith.mulf %0, %7 : vector<8x8x32xf32>
    %9 = vector.shape_cast %8 : vector<8x8x32xf32> to vector<64x32xf32>
    %c0_3 = arith.constant 0 : index
    %c0_4 = arith.constant 0 : index
    %10 = vector.load %arg2[%c0_3, %c0_4] : memref<32x32xf32, #tpu.memory_space<vmem>>, vector<32x32xf32>
    %cst_5 = arith.constant dense<0.000000e+00> : vector<64x32xf32>
    %11 = tpu.matmul %9, %10, %cst_5 {dimension_numbers = #tpu.dot_dimension_numbers<[1], [0], [0], [1], [0, 0, 1, 1], [], []>} : vector<64x32xf32>, vector<32x32xf32>, vector<64x32xf32> -> vector<64x32xf32>
    %c0_6 = arith.constant 0 : index
    %c0_7 = arith.constant 0 : index
    %12 = vector.load %arg3[%c0_6, %c0_7] : memref<1x32xf32, #tpu.memory_space<vmem>>, vector<1x32xf32>
    %13 = vector.broadcast %12 : vector<1x32xf32> to vector<64x32xf32>
    %14 = arith.addf %11, %13 : vector<64x32xf32>
    %15 = math.tanh %14 : vector<64x32xf32>
    %c0_8 = arith.constant 0 : index
    %c0_9 = arith.constant 0 : index
    %16 = vector.load %arg4[%c0_8, %c0_9] : memref<1x32xf32, #tpu.memory_space<vmem>>, vector<1x32xf32>
    %17 = vector.broadcast %16 : vector<1x32xf32> to vector<64x32xf32>
    %18 = arith.mulf %15, %17 : vector<64x32xf32>
    %19 = vector.shape_cast %18 : vector<64x32xf32> to vector<8x8x32xf32>
    %cst_10 = arith.constant dense<0.000000e+00> : vector<8x8xf32>
    %20 = vector.multi_reduction <add>, %19, %cst_10 [2] : vector<8x8x32xf32> to vector<8x8xf32>
    %21 = vector.shape_cast %20 : vector<8x8xf32> to vector<8x8x1xf32>
    %c0_11 = arith.constant 0 : index
    %c0_12 = arith.constant 0 : index
    %22 = memref.load %arg5[%c0_11, %c0_12] : memref<1x1xf32, #tpu.memory_space<smem>>
    %23 = vector.broadcast %22 : f32 to vector<8x8x1xf32>
    %24 = arith.addf %21, %23 : vector<8x8x1xf32>
    %cst_13 = arith.constant dense<0xFF800000> : vector<8x1xf32>
    %25 = vector.multi_reduction <maximumf>, %24, %cst_13 [1] : vector<8x8x1xf32> to vector<8x1xf32>
    %26 = vector.shape_cast %25 : vector<8x1xf32> to vector<8x1x1xf32>
    %27 = vector.broadcast %26 : vector<8x1x1xf32> to vector<8x8x1xf32>
    %28 = arith.subf %24, %27 : vector<8x8x1xf32>
    %29 = math.exp %28 : vector<8x8x1xf32>
    %cst_14 = arith.constant dense<0.000000e+00> : vector<8x1xf32>
    %30 = vector.multi_reduction <add>, %29, %cst_14 [1] : vector<8x8x1xf32> to vector<8x1xf32>
    %31 = vector.shape_cast %30 : vector<8x1xf32> to vector<8x1x1xf32>
    %32 = tpu.reciprocal %31 {approx = true} : vector<8x1x1xf32> -> vector<8x1x1xf32>
    %33 = vector.broadcast %32 : vector<8x1x1xf32> to vector<8x8x1xf32>
    %34 = arith.mulf %29, %33 : vector<8x8x1xf32>
    %35 = vector.broadcast %34 : vector<8x8x1xf32> to vector<8x8x32xf32>
    %36 = arith.mulf %35, %8 : vector<8x8x32xf32>
    %cst_15 = arith.constant dense<0.000000e+00> : vector<8x32xf32>
    %37 = vector.multi_reduction <add>, %36, %cst_15 [1] : vector<8x8x32xf32> to vector<8x32xf32>
    %c0_16 = arith.constant 0 : index
    %c0_17 = arith.constant 0 : index
    %38 = vector.load %arg6[%c0_16, %c0_17] : memref<8x32xf32, #tpu.memory_space<vmem>>, vector<8x32xf32>
    tpu.vector_store %arg6[%c0_16, %c0_17], %37 {strides = array<i32>} : memref<8x32xf32, #tpu.memory_space<vmem>>, vector<8x32xf32>,
    %39 = tpu.iota {dimensions = array<i32: 0>} : vector<8x8xi32>
    %40 = tpu.iota {dimensions = array<i32: 1>} : vector<8x8xi32>
    %41 = arith.cmpi eq, %39, %40 : vector<8x8xi32>
    %42 = arith.extui %41 : vector<8x8xi1> to vector<8x8xi32>
    %43 = arith.sitofp %42 : vector<8x8xi32> to vector<8x8xf32>
    %44 = vector.shape_cast %43 : vector<8x8xf32> to vector<1x8x8xf32>
    %45 = vector.broadcast %34 : vector<8x8x1xf32> to vector<8x8x8xf32>
    %46 = vector.broadcast %44 : vector<1x8x8xf32> to vector<8x8x8xf32>
    %47 = arith.mulf %45, %46 : vector<8x8x8xf32>
    %cst_18 = arith.constant dense<0.000000e+00> : vector<8x8xf32>
    %48 = vector.multi_reduction <add>, %47, %cst_18 [1] : vector<8x8x8xf32> to vector<8x8xf32>
    %c0_19 = arith.constant 0 : index
    %c0_20 = arith.constant 0 : index
    %49 = vector.load %arg7[%c0_19, %c0_20] : memref<8x8xf32, #tpu.memory_space<vmem>>, vector<8x8xf32>
    tpu.vector_store %arg7[%c0_19, %c0_20], %48 {strides = array<i32>} : memref<8x8xf32, #tpu.memory_space<vmem>>, vector<8x8xf32>,
    return
  }
  func.func @transform_0(%arg0: i32) -> (i32, i32, i32) {
    %c0_i32 = arith.constant 0 : i32
    %c0_i32_0 = arith.constant 0 : i32
    %c0_i32_1 = arith.constant 0 : i32
    return %arg0, %c0_i32, %c0_i32_0 : i32, i32, i32
  }
  func.func @transform_1(%arg0: i32) -> (i32, i32) {
    %c0_i32 = arith.constant 0 : i32
    %c0_i32_0 = arith.constant 0 : i32
    %c0_i32_1 = arith.constant 0 : i32
    return %c0_i32, %c0_i32_0 : i32, i32
  }
  func.func @transform_2(%arg0: i32) -> (i32, i32) {
    %c0_i32 = arith.constant 0 : i32
    %c0_i32_0 = arith.constant 0 : i32
    %c0_i32_1 = arith.constant 0 : i32
    return %c0_i32, %c0_i32_0 : i32, i32
  }
  func.func @transform_3(%arg0: i32) -> (i32, i32) {
    %c0_i32 = arith.constant 0 : i32
    %c0_i32_0 = arith.constant 0 : i32
    %c0_i32_1 = arith.constant 0 : i32
    return %c0_i32, %c0_i32_0 : i32, i32
  }
  func.func @transform_4(%arg0: i32) -> (i32, i32) {
    %c0_i32 = arith.constant 0 : i32
    %c0_i32_0 = arith.constant 0 : i32
    %c0_i32_1 = arith.constant 0 : i32
    return %c0_i32, %c0_i32_0 : i32, i32
  }
  func.func @transform_5(%arg0: i32) -> (i32, i32) {
    %c0_i32 = arith.constant 0 : i32
    %c0_i32_0 = arith.constant 0 : i32
    return %arg0, %c0_i32 : i32, i32
  }
  func.func @transform_6(%arg0: i32) -> (i32, i32) {
    %c0_i32 = arith.constant 0 : i32
    %c0_i32_0 = arith.constant 0 : i32
    return %arg0, %c0_i32 : i32, i32
  }
}

</mosaic_0001>

<llo_original>
// kernel: tpu_custom_call.1
$region0: #{tpu_custom_call.1}
  #allocation0 [shape = 'u32[]', space=smem, size = 0x4, offset = 0x4, fixed_abs, tag = 'smem constant byte address 0x4 - core index']
  #allocation1 [shape = 'u32[144,128]{1,0:T(1,128)}', space=vmem, size = 0x12000, scoped, tag = 'internal scratch']
  #allocation2 [shape = 'f32[1,1]{1,0:T(1,128)S(6)}', space=smem, size = 0x200, scoped, tag = 'scoped memory for tpu_custom_call.1']
  %s0 = inlined_call_operand.hbm [shape: f32[16,8,32], index: 0, kind: input, shape index: {}]
  %s1 = inlined_call_operand.hbm [shape: f32[32,32], index: 1, kind: input, shape index: {}]
  %s2 = inlined_call_operand.vmem [shape: f32[1,32], index: 2, kind: input, shape index: {}]
  %s3 = inlined_call_operand.vmem [shape: f32[1,32], index: 3, kind: input, shape index: {}]
  %s4 = inlined_call_operand.<no memory space> [shape: f32[1,1], index: 4, kind: input, shape index: {}]
  %s5 = inlined_call_operand.hbm [shape: f32[16,32], index: 5, kind: output, shape index: {0}]
  %s6 = inlined_call_operand.vmem [shape: f32[16,8], index: 6, kind: output, shape index: {1}]
  %7 = xla_tuple %s5, %s6
  %s8 = sld [smem:[#allocation0]]
  $region69: #{tpu_custom_call.1} parent=0
    _
  %s10 = ssub.s32 1, %s8
  %s11 = scalar_select 0, %s10, %s8
  %12 = sst [smem:[#allocation2]] %s4
  $region1: #{tpu_custom_call.1} parent=0
    #allocation3 [shape = 'u8[65536]{0}', space=vmem, size = 0x10000, scoped, tag = 'input window, operand 0']
    #allocation4 [shape = 's32[2]{0}', space=sflag, size = 0x8, scoped, tag = 'scoped memory for tpu_custom_call.1']
    #allocation5 [shape = 's32[2]{0}', space=sflag, size = 0x8, scoped, tag = 'scoped memory for tpu_custom_call.1']
    #allocation6 [shape = 'u8[16384]{0}', space=vmem, size = 0x4000, scoped, tag = 'input window, operand 1, single buffered']
    #allocation7 [shape = 's32[1]{0}', space=sflag, size = 0x4, scoped, tag = 'scoped memory for tpu_custom_call.1']
    #allocation8 [shape = 'u8[8192]{0}', space=vmem, size = 0x2000, scoped, tag = 'output window, operand 0']
    %13 = vsyncpa [#allocation4], 0
    %s14 = scalar_lea.sflag [#allocation4], 1
    %15 = vsyncpa %s14, 0
    %16 = vsyncpa [#allocation7], 0
    %17 = vsyncpa [#allocation5], 0
    %s18 = scalar_lea.sflag [#allocation5], 1
    %19 = vsyncpa %s18, 0
    loop: start=0, step=1, limit=4
    $region2: #{tpu_custom_call.1} parent=1 // loop_pre_header
      _
    $region3: #{tpu_custom_call.1} parent=1 // loop_header
      %s21 = sphi 0, %s25
      %p22 = scmp.ge.s32.totalorder %s21, 4
      %s31 = sphi 0, %s33
      %s34 = sphi 0, %s31
      %s35 = sphi 0, %s34
      %s51 = sphi 0, %s35
      %s55 = sphi 0, %s55
      %s57 = sphi 0, %s55
      %s58 = sphi 0, %s57
      %s72 = sphi 0, %s58
      %s76 = sphi 0, %s76
      %s78 = sphi 0, %s76
      %s79 = sphi 0, %s78
      %s93 = sphi 0, %s79
      %s97 = sphi 0, %s97
      %s99 = sphi 0, %s97
      %s100 = sphi 0, %s99
      %s114 = sphi 0, %s100
      %s118 = sphi 0, %s118
      %s120 = sphi 0, %s118
      %s121 = sphi 0, %s120
      %s135 = sphi 0, %s121
      %s141 = sphi 0, %s143
      %s144 = sphi 0, %s141
      %s145 = sphi 0, %s144
      %s161 = sphi 0, %s145
      %s167 = sphi 0, %s169
      %s170 = sphi 0, %s167
      %s171 = sphi 0, %s170
      %s187 = sphi 0, %s171
    $region4: #{tpu_custom_call.1} parent=1 // loop_header_branch
      %24 = sbr.rel (%p22) target = $region8
    $region5: #{tpu_custom_call.1} parent=1 // loop_body
      %s26 = ssub.s32 %s21, 1
      %s27 = ssub.s32 %s21, 2
      %s28 = sadd.s32 %s21, 1
      %s29 = ssub.s32 %s21, %s28
      %p30 = scmp.eq.s32.totalorder %s29, 0
      %s32 = sadd.s32 %s31, 1
      %s33 = scalar_select %p30, %s31, %s32
      %p36 = pneg %p30
      %p37 = scmp.eq.s32.totalorder %s21, 1
      %p38 = por %p36, %p37
      %p39 = scmp.ne.s32.totalorder %s31, %s34
      %p40 = scmp.eq.s32.totalorder %s21, 0
      %p41 = por %p39, %p40
      %p42 = scmp.ne.s32.totalorder %s31, %s34
      %p43 = scmp.eq.s32.totalorder %s26, 1
      %p44 = por %p42, %p43
      %p45 = scmp.ne.s32.totalorder %s34, %s35
      %p46 = scmp.eq.s32.totalorder %s26, 0
      %p47 = por %p45, %p46
      %p48 = scmp.ne.s32.totalorder %s34, %s35
      %p49 = scmp.eq.s32.totalorder %s27, 1
      %p50 = por %p48, %p49
      %p52 = scmp.ne.s32.totalorder %s35, %s51
      %p53 = scmp.eq.s32.totalorder %s27, 0
      %p54 = por %p52, %p53
      %s56 = sadd.s32 %s55, 1
      %p59 = scmp.eq.s32.totalorder %s21, 1
      %p60 = scmp.ne.s32.totalorder %s55, %s57
      %p61 = scmp.eq.s32.totalorder %s21, 0
      %p62 = por %p60, %p61
      %p63 = scmp.ne.s32.totalorder %s55, %s57
      %p64 = scmp.eq.s32.totalorder %s26, 1
      %p65 = por %p63, %p64
      %p66 = scmp.ne.s32.totalorder %s57, %s58
      %p67 = scmp.eq.s32.totalorder %s26, 0
      %p68 = por %p66, %p67
      %p69 = scmp.ne.s32.totalorder %s57, %s58
      %p70 = scmp.eq.s32.totalorder %s27, 1
      %p71 = por %p69, %p70
      %p73 = scmp.ne.s32.totalorder %s58, %s72
      %p74 = scmp.eq.s32.totalorder %s27, 0
      %p75 = por %p73, %p74
      %s77 = sadd.s32 %s76, 1
      %p80 = scmp.eq.s32.totalorder %s21, 1
      %p81 = scmp.ne.s32.totalorder %s76, %s78
      %p82 = scmp.eq.s32.totalorder %s21, 0
      %p83 = por %p81, %p82
      %p84 = scmp.ne.s32.totalorder %s76, %s78
      %p85 = scmp.eq.s32.totalorder %s26, 1
      %p86 = por %p84, %p85
      %p87 = scmp.ne.s32.totalorder %s78, %s79
      %p88 = scmp.eq.s32.totalorder %s26, 0
      %p89 = por %p87, %p88
      %p90 = scmp.ne.s32.totalorder %s78, %s79
      %p91 = scmp.eq.s32.totalorder %s27, 1
      %p92 = por %p90, %p91
      %p94 = scmp.ne.s32.totalorder %s79, %s93
      %p95 = scmp.eq.s32.totalorder %s27, 0
      %p96 = por %p94, %p95
      %s98 = sadd.s32 %s97, 1
      %p101 = scmp.eq.s32.totalorder %s21, 1
      %p102 = scmp.ne.s32.totalorder %s97, %s99
      %p103 = scmp.eq.s32.totalorder %s21, 0
      %p104 = por %p102, %p103
      %p105 = scmp.ne.s32.totalorder %s97, %s99
      %p106 = scmp.eq.s32.totalorder %s26, 1
      %p107 = por %p105, %p106
      %p108 = scmp.ne.s32.totalorder %s99, %s100
      %p109 = scmp.eq.s32.totalorder %s26, 0
      %p110 = por %p108, %p109
      %p111 = scmp.ne.s32.totalorder %s99, %s100
      %p112 = scmp.eq.s32.totalorder %s27, 1
      %p113 = por %p111, %p112
      %p115 = scmp.ne.s32.totalorder %s100, %s114
      %p116 = scmp.eq.s32.totalorder %s27, 0
      %p117 = por %p115, %p116
      %s119 = sadd.s32 %s118, 1
      %p122 = scmp.eq.s32.totalorder %s21, 1
      %p123 = scmp.ne.s32.totalorder %s118, %s120
      %p124 = scmp.eq.s32.totalorder %s21, 0
      %p125 = por %p123, %p124
      %p126 = scmp.ne.s32.totalorder %s118, %s120
      %p127 = scmp.eq.s32.totalorder %s26, 1
      %p128 = por %p126, %p127
      %p129 = scmp.ne.s32.totalorder %s120, %s121
      %p130 = scmp.eq.s32.totalorder %s26, 0
      %p131 = por %p129, %p130
      %p132 = scmp.ne.s32.totalorder %s120, %s121
      %p133 = scmp.eq.s32.totalorder %s27, 1
      %p134 = por %p132, %p133
      %p136 = scmp.ne.s32.totalorder %s121, %s135
      %p137 = scmp.eq.s32.totalorder %s27, 0
      %p138 = por %p136, %p137
      %s139 = ssub.s32 %s21, %s28
      %p140 = scmp.eq.s32.totalorder %s139, 0
      %s142 = sadd.s32 %s141, 1
      %s143 = scalar_select %p140, %s141, %s142
      %p146 = pneg %p140
      %p147 = scmp.eq.s32.totalorder %s21, 1
      %p148 = por %p146, %p147
      %p149 = scmp.ne.s32.totalorder %s141, %s144
      %p150 = scmp.eq.s32.totalorder %s21, 0
      %p151 = por %p149, %p150
      %p152 = scmp.ne.s32.totalorder %s141, %s144
      %p153 = scmp.eq.s32.totalorder %s26, 1
      %p154 = por %p152, %p153
      %p155 = scmp.ne.s32.totalorder %s144, %s145
      %p156 = scmp.eq.s32.totalorder %s26, 0
      %p157 = por %p155, %p156
      %p158 = scmp.ne.s32.totalorder %s144, %s145
      %p159 = scmp.eq.s32.totalorder %s27, 1
      %p160 = por %p158, %p159
      %p162 = scmp.ne.s32.totalorder %s145, %s161
      %p163 = scmp.eq.s32.totalorder %s27, 0
      %p164 = por %p162, %p163
      %s165 = ssub.s32 %s21, %s28
      %p166 = scmp.eq.s32.totalorder %s165, 0
      %s168 = sadd.s32 %s167, 1
      %s169 = scalar_select %p166, %s167, %s168
      %p172 = pneg %p166
      %p173 = scmp.eq.s32.totalorder %s21, 1
      %p174 = por %p172, %p173
      %p175 = scmp.ne.s32.totalorder %s167, %s170
      %p176 = scmp.eq.s32.totalorder %s21, 0
      %p177 = por %p175, %p176
      %p178 = scmp.ne.s32.totalorder %s167, %s170
      %p179 = scmp.eq.s32.totalorder %s26, 1
      %p180 = por %p178, %p179
      %p181 = scmp.ne.s32.totalorder %s170, %s171
      %p182 = scmp.eq.s32.totalorder %s26, 0
      %p183 = por %p181, %p182
      %p184 = scmp.ne.s32.totalorder %s170, %s171
      %p185 = scmp.eq.s32.totalorder %s27, 1
      %p186 = por %p184, %p185
      %p188 = scmp.ne.s32.totalorder %s171, %s187
      %p189 = scmp.eq.s32.totalorder %s27, 0
      %p190 = por %p188, %p189
      %p191 = scmp.le.s32.totalorder 1, %s21
      %p192 = scmp.lt.s32.totalorder %s21, 3
      %p193 = pnand %p191, %p192
      %p194 = pneg %p193
      // Predicated region
      $region9: #{tpu_custom_call.1} parent=5 // pred_check
        _
      $region10: #{tpu_custom_call.1} parent=5 // pred_check_branch
        %196 = sbr.rel (%p193) target = $region12
      $region11: #{tpu_custom_call.1} parent=5 // pred_region
        %s197 = ssub.s32 %s21, 1
        // Predicated region
        $region13: #{tpu_custom_call.1} parent=11 // pred_check
          %p198 = pneg %p68
        $region14: #{tpu_custom_call.1} parent=11 // pred_check_branch
          %200 = sbr.rel (%p198) target = $region16
        $region15: #{tpu_custom_call.1} parent=11 // pred_region
          %s202 = ssub.s32 512, 512
          %203 = vsyncadd [#allocation7], %s202
          %s204 = sshll.u32 [#allocation6], 4
          %s205 = int_to_ptr.vmem [resolvable:$true] %s204
          %210 = dma.hbm_to_vmem [thread:$0]  %s1, 512, %s205, [#allocation7], 128, 128, 8
        $region16: #{tpu_custom_call.1} parent=11 // pred_fallthru
          _
        // Predicated region
        $region17: #{tpu_custom_call.1} parent=11 // pred_check
          %p211 = pneg %p89
        $region18: #{tpu_custom_call.1} parent=11 // pred_check_branch
          %213 = sbr.rel (%p211) target = $region20
        $region19: #{tpu_custom_call.1} parent=11 // pred_region
          _
        $region20: #{tpu_custom_call.1} parent=11 // pred_fallthru
          _
        // Predicated region
        $region21: #{tpu_custom_call.1} parent=11 // pred_check
          %p214 = pneg %p110
        $region22: #{tpu_custom_call.1} parent=11 // pred_check_branch
          %216 = sbr.rel (%p214) target = $region24
        $region23: #{tpu_custom_call.1} parent=11 // pred_region
          _
        $region24: #{tpu_custom_call.1} parent=11 // pred_fallthru
          _
        // Predicated region
        $region25: #{tpu_custom_call.1} parent=11 // pred_check
          %p217 = pneg %p131
        $region26: #{tpu_custom_call.1} parent=11 // pred_check_branch
          %219 = sbr.rel (%p217) target = $region28
        $region27: #{tpu_custom_call.1} parent=11 // pred_region
          _
        $region28: #{tpu_custom_call.1} parent=11 // pred_fallthru
          _
      $region12: #{tpu_custom_call.1} parent=5 // pred_fallthru
        _
      %p220 = scmp.lt.s32.totalorder %s21, 2
      // Predicated region
      $region29: #{tpu_custom_call.1} parent=5 // pred_check
        %p221 = pneg %p220
      $region30: #{tpu_custom_call.1} parent=5 // pred_check_branch
        %223 = sbr.rel (%p221) target = $region32
      $region31: #{tpu_custom_call.1} parent=5 // pred_region
        // Predicated region
        $region33: #{tpu_custom_call.1} parent=31 // pred_check
          %p224 = pneg %p41
        $region34: #{tpu_custom_call.1} parent=31 // pred_check_branch
          %226 = sbr.rel (%p224) target = $region36
        $region35: #{tpu_custom_call.1} parent=31 // pred_region
          %s227 = sand.u32 %s31, 1
          %s228 = scalar_lea.sflag [#allocation4], %s227
          %s229 = sand.u32 %s31, 1
          %s230 = smul.addr %s229, 64
          %s231 = scalar_lea.vmem [#allocation3], %s230
          %s232 = smul.u32 8, %s21
          %s234 = ssub.s32 1024, 1024
          %235 = vsyncadd %s228, %s234
          %s236 = smul.addr %s232, 128
          %s237 = scalar_lea.hbm %s0, %s236
          %s238 = sshll.u32 %s231, 4
          %s239 = int_to_ptr.vmem [resolvable:$true] %s238
          %244 = dma.hbm_to_vmem [thread:$0]  %s237, 1024, %s239, %s228, 128, 128, 8
        $region36: #{tpu_custom_call.1} parent=31 // pred_fallthru
          _
      $region32: #{tpu_custom_call.1} parent=5 // pred_fallthru
        _
      %p245 = scmp.le.s32.totalorder 1, %s21
      %p246 = scmp.lt.s32.totalorder %s21, 3
      %p247 = pnand %p245, %p246
      %p248 = pneg %p247
      // Predicated region
      $region37: #{tpu_custom_call.1} parent=5 // pred_check
        _
      $region38: #{tpu_custom_call.1} parent=5 // pred_check_branch
        %250 = sbr.rel (%p247) target = $region40
      $region39: #{tpu_custom_call.1} parent=5 // pred_region
        %s251 = ssub.s32 %s21, 1
        %s252 = sand.u32 %s34, 1
        %s253 = scalar_lea.sflag [#allocation4], %s252
        %s254 = sand.u32 %s34, 1
        %s255 = smul.addr %s254, 64
        %s256 = scalar_lea.vmem [#allocation3], %s255
        // Predicated region
        $region41: #{tpu_custom_call.1} parent=39 // pred_check
          %p257 = pneg %p47
        $region42: #{tpu_custom_call.1} parent=39 // pred_check_branch
          %259 = sbr.rel (%p257) target = $region44
        $region43: #{tpu_custom_call.1} parent=39 // pred_region
          %260 = dma.done %s253, 1024
        $region44: #{tpu_custom_call.1} parent=39 // pred_fallthru
          _
        // Predicated region
        $region45: #{tpu_custom_call.1} parent=39 // pred_check
          %p261 = pneg %p68
        $region46: #{tpu_custom_call.1} parent=39 // pred_check_branch
          %263 = sbr.rel (%p261) target = $region48
        $region47: #{tpu_custom_call.1} parent=39 // pred_region
          %264 = dma.done [#allocation7], 512
        $region48: #{tpu_custom_call.1} parent=39 // pred_fallthru
          _
        %s265 = sand.u32 %s34, 1
        %s266 = scalar_lea.sflag [#allocation4], %s265
        %s267 = sand.u32 %s34, 1
        %s268 = smul.addr %s267, 64
        %s269 = scalar_lea.vmem [#allocation3], %s268
        %p270 = pneg %p47
        %p271 = pneg %p44
        %p272 = pneg %p68
        %p273 = pneg %p65
        %p274 = pneg %p89
        %p275 = pneg %p86
        %p276 = pneg %p110
        %p277 = pneg %p107
        %p278 = pneg %p131
        %p279 = pneg %p128
        %p280 = pneg %p157
        %p281 = pneg %p154
        %s282 = sand.u32 %s144, 1
        %s283 = scalar_lea.sflag [#allocation5], %s282
        %s284 = sand.u32 %s144, 1
        %s285 = smul.addr %s284, 8
        %s286 = scalar_lea.vmem [#allocation8], %s285
        %p287 = pneg %p183
        %p288 = pneg %p180
        %p289 = scmp.lt.s32.totalorder %s26, 1
        %s290 = scalar_select %p289, %s26, 1
        %s291 = smul.addr %s290, 8
        %s292 = scalar_lea.vmem %s6, %s291
        %s293 = smul.u32 8, %s26
        %p294 = scmp.lt.s32.totalorder %s26, 1
        %s295 = scalar_select %p294, %s26, 1
        %s296 = smul.addr %s295, 8
        %s297 = scalar_lea.vmem %s6, %s296
        %v298 = vld [vmem:[%s256] sm:$0xff]
        %v299 = vld [vmem:[%s256 + $0x8] sm:$0xff]
        %v300 = vld [vmem:[%s256 + $0x10] sm:$0xff]
        %v301 = vld [vmem:[%s256 + $0x18] sm:$0xff]
        %v302 = vld [vmem:[%s256 + $0x20] sm:$0xff]
        %v303 = vld [vmem:[%s256 + $0x28] sm:$0xff]
        %v304 = vld [vmem:[%s256 + $0x30] sm:$0xff]
        %v305 = vld [vmem:[%s256 + $0x38] sm:$0xff]
        %v306 = vmul.f32 %v298, %v298
        %v307 = vmul.f32 %v299, %v299
        %v308 = vmul.f32 %v300, %v300
        %v309 = vmul.f32 %v301, %v301
        %v310 = vmul.f32 %v302, %v302
        %v311 = vmul.f32 %v303, %v303
        %v312 = vmul.f32 %v304, %v304
        %v313 = vmul.f32 %v305, %v305
        %vm314 = vcmask 261120
        %v315 = vsel %vm314, %v306, 0.0
        %316 = vadd.xlane.f32.xlu0 %v315
        %v317 = vpop.xlane.xlu0 %316
        %v318 = vsel %vm314, %v307, 0.0
        %319 = vadd.xlane.f32.xlu0 %v318
        %v320 = vpop.xlane.xlu0 %319
        %v321 = vsel %vm314, %v308, 0.0
        %322 = vadd.xlane.f32.xlu0 %v321
        %v323 = vpop.xlane.xlu0 %322
        %v324 = vsel %vm314, %v309, 0.0
        %325 = vadd.xlane.f32.xlu0 %v324
        %v326 = vpop.xlane.xlu0 %325
        %v327 = vsel %vm314, %v310, 0.0
        %328 = vadd.xlane.f32.xlu0 %v327
        %v329 = vpop.xlane.xlu0 %328
        %v330 = vsel %vm314, %v311, 0.0
        %331 = vadd.xlane.f32.xlu0 %v330
        %v332 = vpop.xlane.xlu0 %331
        %v333 = vsel %vm314, %v312, 0.0
        %334 = vadd.xlane.f32.xlu0 %v333
        %v335 = vpop.xlane.xlu0 %334
        %v336 = vsel %vm314, %v313, 0.0
        %337 = vadd.xlane.f32.xlu0 %v336
        %v338 = vpop.xlane.xlu0 %337
        %v339 = vmax.f32 %v317, 1e-24
        %v340 = vmax.f32 %v320, 1e-24
        %v341 = vmax.f32 %v323, 1e-24
        %v342 = vmax.f32 %v326, 1e-24
        %v343 = vmax.f32 %v329, 1e-24
        %v344 = vmax.f32 %v332, 1e-24
        %v345 = vmax.f32 %v335, 1e-24
        %v346 = vmax.f32 %v338, 1e-24
        %v347 = vrsqrt.pop %v339
        %v348 = vrsqrt.pop %v340
        %v349 = vrsqrt.pop %v341
        %v350 = vrsqrt.pop %v342
        %v351 = vrsqrt.pop %v343
        %v352 = vrsqrt.pop %v344
        %v353 = vrsqrt.pop %v345
        %v354 = vrsqrt.pop %v346
        %v355 = vmul.f32 %v298, %v347
        %v356 = vmul.f32 %v299, %v348
        %v357 = vmul.f32 %v300, %v349
        %v358 = vmul.f32 %v301, %v350
        %v359 = vmul.f32 %v302, %v351
        %v360 = vmul.f32 %v303, %v352
        %v361 = vmul.f32 %v304, %v353
        %v362 = vmul.f32 %v305, %v354
        %v363 = vld [vmem:[#allocation6] sm:$0xff]
        %v364 = vld [vmem:[#allocation6 + $0x8] sm:$0xff]
        %v365 = vld [vmem:[#allocation6 + $0x10] sm:$0xff]
        %v366 = vld [vmem:[#allocation6 + $0x18] sm:$0xff]
        %v367 = vld [vmem:[%s2] sm:$0x1]
        %v369 = vlaneseq
        %v370 = vshrl.u32 %v369, 7
        %v371 = vsub.s32 0, %v370
        %v372 = vrot.slane %v367, %v371
        %v375 = vsel %vm314, %v355, 0
        %v378 = vsel %vm314, %v356, 0
        %v381 = vsel %vm314, %v357, 0
        %v384 = vsel %vm314, %v358, 0
        %v387 = vsel %vm314, %v359, 0
        %v390 = vsel %vm314, %v360, 0
        %v393 = vsel %vm314, %v361, 0
        %v396 = vsel %vm314, %v362, 0
        %398 = vmatprep.subr.mxu0 0.0
        %399 = vmatpush1.msra.mxu0 %v363
        %400 = vmatprep.subr.mxu0 0.0
        %401 = vmatpush1.msra.mxu0 %v364
        %402 = vmatprep.subr.mxu0 0.0
        %403 = vmatpush1.msra.mxu0 %v365
        %404 = vmatprep.subr.mxu0 0.0
        %405 = vmatpush1.msra.mxu0 %v366
        %406 = vmatprep.subr.mxu0 0.0
        %407 = vmatpush1.msra.mxu0 0.0
        %408 = vmatprep.subr.mxu0 0.0
        %409 = vmatpush1.msra.mxu0 0.0
        %410 = vmatprep.subr.mxu0 0.0
        %411 = vmatpush1.msra.mxu0 0.0
        %412 = vmatprep.subr.mxu0 0.0
        %413 = vmatpush1.msra.mxu0 0.0
        %414 = vmatprep.subr.mxu0 0.0
        %415 = vmatpush1.msra.mxu0 0.0
        %416 = vmatprep.subr.mxu0 0.0
        %417 = vmatpush1.msra.mxu0 0.0
        %418 = vmatprep.subr.mxu0 0.0
        %419 = vmatpush1.msra.mxu0 0.0
        %420 = vmatprep.subr.mxu0 0.0
        %421 = vmatpush1.msra.mxu0 0.0
        %422 = vmatprep.subr.mxu0 0.0
        %423 = vmatpush1.msra.mxu0 0.0
        %424 = vmatprep.subr.mxu0 0.0
        %425 = vmatpush1.msra.mxu0 0.0
        %426 = vmatprep.subr.mxu0 0.0
        %427 = vmatpush1.msra.mxu0 0.0
        %428 = vmatprep.subr.mxu0 0.0
        %429 = vmatpush1.msra.mxu0 0.0
        %430 = vmatprep.subr.mxu0 0.0
        %431 = vmatpush1.msra.mxu0 0.0
        %432 = vmatprep.subr.mxu0 0.0
        %433 = vmatpush1.msra.mxu0 0.0
        %434 = vmatprep.subr.mxu0 0.0
        %435 = vmatpush1.msra.mxu0 0.0
        %436 = vmatprep.subr.mxu0 0.0
        %437 = vmatpush1.msra.mxu0 0.0
        %438 = vmatprep.subr.mxu0 0.0
        %439 = vmatpush1.msra.mxu0 0.0
        %440 = vmatprep.subr.mxu0 0.0
        %441 = vmatpush1.msra.mxu0 0.0
        %442 = vmatprep.subr.mxu0 0.0
        %443 = vmatpush1.msra.mxu0 0.0
        %444 = vmatprep.subr.mxu0 0.0
        %445 = vmatpush1.msra.mxu0 0.0
        %446 = vmatprep.subr.mxu0 0.0
        %447 = vmatpush1.msra.mxu0 0.0
        %448 = vmatprep.subr.mxu0 0.0
        %449 = vmatpush1.msra.mxu0 0.0
        %450 = vmatprep.subr.mxu0 0.0
        %451 = vmatpush1.msra.mxu0 0.0
        %452 = vmatprep.subr.mxu0 0.0
        %453 = vmatpush1.msra.mxu0 0.0
        %454 = vmatprep.subr.mxu0 0.0
        %455 = vmatpush1.msra.mxu0 0.0
        %456 = vmatprep.subr.mxu0 0.0
        %457 = vmatpush1.msra.mxu0 0.0
        %458 = vmatprep.subr.mxu0 0.0
        %459 = vmatpush1.msra.mxu0 0.0
        %460 = vmatprep.subr.mxu0 0.0
        %461 = vmatpush1.msra.mxu0 0.0
        %462 = vmatprep.mubr.f32.mxu0 0.0
        %463 = vmatmul.mubr.f32.gmra.mrb[0].mxu0 %v375
        %v464 = vpop.f32.mrb[0].mxu0
        %v465 = vadd.f32 %v372, %v464
        %v466 = vpop.f32.mrb[0].mxu0
        %467 = vmatprep.mubr.f32.mxu0 0.0
        %468 = vmatmul.mubr.f32.gmra.mrb[0].mxu0 %v378
        %v469 = vpop.f32.mrb[0].mxu0
        %v470 = vadd.f32 %v372, %v469
        %v471 = vpop.f32.mrb[0].mxu0
        %472 = vmatprep.mubr.f32.mxu0 0.0
        %473 = vmatmul.mubr.f32.gmra.mrb[0].mxu0 %v381
        %v474 = vpop.f32.mrb[0].mxu0
        %v475 = vadd.f32 %v372, %v474
        %v476 = vpop.f32.mrb[0].mxu0
        %477 = vmatprep.mubr.f32.mxu0 0.0
        %478 = vmatmul.mubr.f32.gmra.mrb[0].mxu0 %v384
        %v479 = vpop.f32.mrb[0].mxu0
        %v480 = vadd.f32 %v372, %v479
        %v481 = vpop.f32.mrb[0].mxu0
        %482 = vmatprep.mubr.f32.mxu0 0.0
        %483 = vmatmul.mubr.f32.gmra.mrb[0].mxu0 %v387
        %v484 = vpop.f32.mrb[0].mxu0
        %v485 = vadd.f32 %v372, %v484
        %v486 = vpop.f32.mrb[0].mxu0
        %487 = vmatprep.mubr.f32.mxu0 0.0
        %488 = vmatmul.mubr.f32.gmra.mrb[0].mxu0 %v390
        %v489 = vpop.f32.mrb[0].mxu0
        %v490 = vadd.f32 %v372, %v489
        %v491 = vpop.f32.mrb[0].mxu0
        %492 = vmatprep.mubr.f32.mxu0 0.0
        %493 = vmatmul.mubr.f32.gmra.mrb[0].mxu0 %v393
        %v494 = vpop.f32.mrb[0].mxu0
        %v495 = vadd.f32 %v372, %v494
        %v496 = vpop.f32.mrb[0].mxu0
        %497 = vmatprep.mubr.f32.mxu0 0.0
        %498 = vmatmul.mubr.f32.gmra.mrb[0].mxu0 %v396
        %v499 = vpop.f32.mrb[0].mxu0
        %v500 = vadd.f32 %v372, %v499
        %v501 = vpop.f32.mrb[0].mxu0
        %502 = vdwg.mxu0
        %v503 = vtanh.pop %v465
        %v504 = vtanh.pop %v470
        %v505 = vtanh.pop %v475
        %v506 = vtanh.pop %v480
        %v507 = vtanh.pop %v485
        %v508 = vtanh.pop %v490
        %v509 = vtanh.pop %v495
        %v510 = vtanh.pop %v500
        %v511 = vld [vmem:[%s3] sm:$0x1]
        %v513 = vlaneseq
        %v514 = vshrl.u32 %v513, 7
        %v515 = vsub.s32 0, %v514
        %v516 = vrot.slane %v511, %v515
        %v518 = vmul.f32 %v503, %v516
        %v519 = vmul.f32 %v504, %v516
        %v520 = vmul.f32 %v505, %v516
        %v521 = vmul.f32 %v506, %v516
        %v522 = vmul.f32 %v507, %v516
        %v523 = vmul.f32 %v508, %v516
        %v524 = vmul.f32 %v509, %v516
        %v525 = vmul.f32 %v510, %v516
        %v526 = vsel %vm314, %v518, 0.0
        %527 = vadd.xlane.f32.xlu0 %v526
        %v528 = vpop.xlane.xlu0 %527
        %v529 = vsel %vm314, %v519, 0.0
        %530 = vadd.xlane.f32.xlu0 %v529
        %v531 = vpop.xlane.xlu0 %530
        %v532 = vsel %vm314, %v520, 0.0
        %533 = vadd.xlane.f32.xlu0 %v532
        %v534 = vpop.xlane.xlu0 %533
        %v535 = vsel %vm314, %v521, 0.0
        %536 = vadd.xlane.f32.xlu0 %v535
        %v537 = vpop.xlane.xlu0 %536
        %v538 = vsel %vm314, %v522, 0.0
        %539 = vadd.xlane.f32.xlu0 %v538
        %v540 = vpop.xlane.xlu0 %539
        %v541 = vsel %vm314, %v523, 0.0
        %542 = vadd.xlane.f32.xlu0 %v541
        %v543 = vpop.xlane.xlu0 %542
        %v544 = vsel %vm314, %v524, 0.0
        %545 = vadd.xlane.f32.xlu0 %v544
        %v546 = vpop.xlane.xlu0 %545
        %v547 = vsel %vm314, %v525, 0.0
        %548 = vadd.xlane.f32.xlu0 %v547
        %v549 = vpop.xlane.xlu0 %548
        %s550 = sld [smem:[#allocation2]]
        %v551 = vstv %s550
        %v552 = vadd.f32 %v528, %v551
        %v553 = vadd.f32 %v531, %v551
        %v554 = vadd.f32 %v534, %v551
        %v555 = vadd.f32 %v537, %v551
        %v556 = vadd.f32 %v540, %v551
        %v557 = vadd.f32 %v543, %v551
        %v558 = vadd.f32 %v546, %v551
        %v559 = vadd.f32 %v549, %v551
        %v560 = vrot.slane %v552, 4
        %v561 = vmax.f32 %v552, %v560
        %v562 = vrot.slane %v561, 2
        %v563 = vmax.f32 %v561, %v562
        %v564 = vrot.slane %v563, 1
        %v565 = vmax.f32 %v563, %v564
        %v566 = vrot.slane %v553, 4
        %v567 = vmax.f32 %v553, %v566
        %v568 = vrot.slane %v567, 2
        %v569 = vmax.f32 %v567, %v568
        %v570 = vrot.slane %v569, 1
        %v571 = vmax.f32 %v569, %v570
        %v572 = vrot.slane %v554, 4
        %v573 = vmax.f32 %v554, %v572
        %v574 = vrot.slane %v573, 2
        %v575 = vmax.f32 %v573, %v574
        %v576 = vrot.slane %v575, 1
        %v577 = vmax.f32 %v575, %v576
        %v578 = vrot.slane %v555, 4
        %v579 = vmax.f32 %v555, %v578
        %v580 = vrot.slane %v579, 2
        %v581 = vmax.f32 %v579, %v580
        %v582 = vrot.slane %v581, 1
        %v583 = vmax.f32 %v581, %v582
        %v584 = vrot.slane %v556, 4
        %v585 = vmax.f32 %v556, %v584
        %v586 = vrot.slane %v585, 2
        %v587 = vmax.f32 %v585, %v586
        %v588 = vrot.slane %v587, 1
        %v589 = vmax.f32 %v587, %v588
        %v590 = vrot.slane %v557, 4
        %v591 = vmax.f32 %v557, %v590
        %v592 = vrot.slane %v591, 2
        %v593 = vmax.f32 %v591, %v592
        %v594 = vrot.slane %v593, 1
        %v595 = vmax.f32 %v593, %v594
        %v596 = vrot.slane %v558, 4
        %v597 = vmax.f32 %v558, %v596
        %v598 = vrot.slane %v597, 2
        %v599 = vmax.f32 %v597, %v598
        %v600 = vrot.slane %v599, 1
        %v601 = vmax.f32 %v599, %v600
        %v602 = vrot.slane %v559, 4
        %v603 = vmax.f32 %v559, %v602
        %v604 = vrot.slane %v603, 2
        %v605 = vmax.f32 %v603, %v604
        %v606 = vrot.slane %v605, 1
        %v607 = vmax.f32 %v605, %v606
        %v608 = vsub.f32 %v552, %v565
        %v609 = vsub.f32 %v553, %v571
        %v610 = vsub.f32 %v554, %v577
        %v611 = vsub.f32 %v555, %v583
        %v612 = vsub.f32 %v556, %v589
        %v613 = vsub.f32 %v557, %v595
        %v614 = vsub.f32 %v558, %v601
        %v615 = vsub.f32 %v559, %v607
        %v616 = vmul.f32 %v608, 1.442695
        %v617 = vpow.pop %v616
        %v618 = vmul.f32 %v609, 1.442695
        %v619 = vpow.pop %v618
        %v620 = vmul.f32 %v610, 1.442695
        %v621 = vpow.pop %v620
        %v622 = vmul.f32 %v611, 1.442695
        %v623 = vpow.pop %v622
        %v624 = vmul.f32 %v612, 1.442695
        %v625 = vpow.pop %v624
        %v626 = vmul.f32 %v613, 1.442695
        %v627 = vpow.pop %v626
        %v628 = vmul.f32 %v614, 1.442695
        %v629 = vpow.pop %v628
        %v630 = vmul.f32 %v615, 1.442695
        %v631 = vpow.pop %v630
        %v632 = vrot.slane %v617, 4
        %v633 = vadd.f32 %v617, %v632
        %v634 = vrot.slane %v633, 2
        %v635 = vadd.f32 %v633, %v634
        %v636 = vrot.slane %v635, 1
        %v637 = vadd.f32 %v635, %v636
        %v638 = vrot.slane %v619, 4
        %v639 = vadd.f32 %v619, %v638
        %v640 = vrot.slane %v639, 2
        %v641 = vadd.f32 %v639, %v640
        %v642 = vrot.slane %v641, 1
        %v643 = vadd.f32 %v641, %v642
        %v644 = vrot.slane %v621, 4
        %v645 = vadd.f32 %v621, %v644
        %v646 = vrot.slane %v645, 2
        %v647 = vadd.f32 %v645, %v646
        %v648 = vrot.slane %v647, 1
        %v649 = vadd.f32 %v647, %v648
        %v650 = vrot.slane %v623, 4
        %v651 = vadd.f32 %v623, %v650
        %v652 = vrot.slane %v651, 2
        %v653 = vadd.f32 %v651, %v652
        %v654 = vrot.slane %v653, 1
        %v655 = vadd.f32 %v653, %v654
        %v656 = vrot.slane %v625, 4
        %v657 = vadd.f32 %v625, %v656
        %v658 = vrot.slane %v657, 2
        %v659 = vadd.f32 %v657, %v658
        %v660 = vrot.slane %v659, 1
        %v661 = vadd.f32 %v659, %v660
        %v662 = vrot.slane %v627, 4
        %v663 = vadd.f32 %v627, %v662
        %v664 = vrot.slane %v663, 2
        %v665 = vadd.f32 %v663, %v664
        %v666 = vrot.slane %v665, 1
        %v667 = vadd.f32 %v665, %v666
        %v668 = vrot.slane %v629, 4
        %v669 = vadd.f32 %v629, %v668
        %v670 = vrot.slane %v669, 2
        %v671 = vadd.f32 %v669, %v670
        %v672 = vrot.slane %v671, 1
        %v673 = vadd.f32 %v671, %v672
        %v674 = vrot.slane %v631, 4
        %v675 = vadd.f32 %v631, %v674
        %v676 = vrot.slane %v675, 2
        %v677 = vadd.f32 %v675, %v676
        %v678 = vrot.slane %v677, 1
        %v679 = vadd.f32 %v677, %v678
        %v680 = vrcp.pop %v637
        %v681 = vrcp.pop %v643
        %v682 = vrcp.pop %v649
        %v683 = vrcp.pop %v655
        %v684 = vrcp.pop %v661
        %v685 = vrcp.pop %v667
        %v686 = vrcp.pop %v673
        %v687 = vrcp.pop %v679
        %v688 = vmul.f32 %v617, %v680
        %v689 = vmul.f32 %v619, %v681
        %v690 = vmul.f32 %v621, %v682
        %v691 = vmul.f32 %v623, %v683
        %v692 = vmul.f32 %v625, %v684
        %v693 = vmul.f32 %v627, %v685
        %v694 = vmul.f32 %v629, %v686
        %v695 = vmul.f32 %v631, %v687
        %v696 = vmul.f32 %v688, %v355
        %v697 = vmul.f32 %v689, %v356
        %v698 = vmul.f32 %v690, %v357
        %v699 = vmul.f32 %v691, %v358
        %v700 = vmul.f32 %v692, %v359
        %v701 = vmul.f32 %v693, %v360
        %v702 = vmul.f32 %v694, %v361
        %v703 = vmul.f32 %v695, %v362
        %v704 = vsel %vm314, %v696, 0.0
        %v705 = vrot.slane %v704, 4
        %v706 = vadd.f32 %v704, %v705
        %v707 = vrot.slane %v706, 2
        %v708 = vadd.f32 %v706, %v707
        %v709 = vrot.slane %v708, 1
        %v710 = vadd.f32 %v708, %v709
        %v711 = vsel %vm314, %v697, 0.0
        %v712 = vrot.slane %v711, 4
        %v713 = vadd.f32 %v711, %v712
        %v714 = vrot.slane %v713, 2
        %v715 = vadd.f32 %v713, %v714
        %v716 = vrot.slane %v715, 1
        %v717 = vadd.f32 %v715, %v716
        %v718 = vsel %vm314, %v698, 0.0
        %v719 = vrot.slane %v718, 4
        %v720 = vadd.f32 %v718, %v719
        %v721 = vrot.slane %v720, 2
        %v722 = vadd.f32 %v720, %v721
        %v723 = vrot.slane %v722, 1
        %v724 = vadd.f32 %v722, %v723
        %v725 = vsel %vm314, %v699, 0.0
        %v726 = vrot.slane %v725, 4
        %v727 = vadd.f32 %v725, %v726
        %v728 = vrot.slane %v727, 2
        %v729 = vadd.f32 %v727, %v728
        %v730 = vrot.slane %v729, 1
        %v731 = vadd.f32 %v729, %v730
        %v732 = vsel %vm314, %v700, 0.0
        %v733 = vrot.slane %v732, 4
        %v734 = vadd.f32 %v732, %v733
        %v735 = vrot.slane %v734, 2
        %v736 = vadd.f32 %v734, %v735
        %v737 = vrot.slane %v736, 1
        %v738 = vadd.f32 %v736, %v737
        %v739 = vsel %vm314, %v701, 0.0
        %v740 = vrot.slane %v739, 4
        %v741 = vadd.f32 %v739, %v740
        %v742 = vrot.slane %v741, 2
        %v743 = vadd.f32 %v741, %v742
        %v744 = vrot.slane %v743, 1
        %v745 = vadd.f32 %v743, %v744
        %v746 = vsel %vm314, %v702, 0.0
        %v747 = vrot.slane %v746, 4
        %v748 = vadd.f32 %v746, %v747
        %v749 = vrot.slane %v748, 2
        %v750 = vadd.f32 %v748, %v749
        %v751 = vrot.slane %v750, 1
        %v752 = vadd.f32 %v750, %v751
        %v753 = vsel %vm314, %v703, 0.0
        %v754 = vrot.slane %v753, 4
        %v755 = vadd.f32 %v753, %v754
        %v756 = vrot.slane %v755, 2
        %v757 = vadd.f32 %v755, %v756
        %v758 = vrot.slane %v757, 1
        %v759 = vadd.f32 %v757, %v758
        %vm768 = vcmask 1041409
        %v769 = vsel %vm768, %v717, %v710
        %vm770 = vcmask 1042434
        %v771 = vsel %vm770, %v724, %v769
        %vm772 = vcmask 1043459
        %v773 = vsel %vm772, %v731, %v771
        %vm774 = vcmask 1044484
        %v775 = vsel %vm774, %v738, %v773
        %vm776 = vcmask 1045509
        %v777 = vsel %vm776, %v745, %v775
        %vm778 = vcmask 1046534
        %v779 = vsel %vm778, %v752, %v777
        %vm780 = vcmask 1047559
        %v781 = vsel %vm780, %v759, %v779
        %783 = vst.msk [vmem:[%s286] sm:$0xff] %vm314, %v781
        %v784 = vlaneseq
        %v785 = vshrl.u32 %v784, 7
        %v786 = vlaneseq
        %v787 = vand.u32 %v786, 127
        %vm788 = vcmp.eq.s32.totalorder %v785, %v787
        %v789 = vsel %vm788, 1, 0
        %v790 = vcvt.s32.f32 %v789
        %v791 = vmul.f32 %v688, %v790
        %v792 = vmul.f32 %v689, %v790
        %v793 = vmul.f32 %v690, %v790
        %v794 = vmul.f32 %v691, %v790
        %v795 = vmul.f32 %v692, %v790
        %v796 = vmul.f32 %v693, %v790
        %v797 = vmul.f32 %v694, %v790
        %v798 = vmul.f32 %v695, %v790
        %vm799 = vcmask 64512
        %v800 = vsel %vm799, %v791, 0.0
        %v801 = vrot.slane %v800, 4
        %v802 = vadd.f32 %v800, %v801
        %v803 = vrot.slane %v802, 2
        %v804 = vadd.f32 %v802, %v803
        %v805 = vrot.slane %v804, 1
        %v806 = vadd.f32 %v804, %v805
        %v807 = vsel %vm799, %v792, 0.0
        %v808 = vrot.slane %v807, 4
        %v809 = vadd.f32 %v807, %v808
        %v810 = vrot.slane %v809, 2
        %v811 = vadd.f32 %v809, %v810
        %v812 = vrot.slane %v811, 1
        %v813 = vadd.f32 %v811, %v812
        %v814 = vsel %vm799, %v793, 0.0
        %v815 = vrot.slane %v814, 4
        %v816 = vadd.f32 %v814, %v815
        %v817 = vrot.slane %v816, 2
        %v818 = vadd.f32 %v816, %v817
        %v819 = vrot.slane %v818, 1
        %v820 = vadd.f32 %v818, %v819
        %v821 = vsel %vm799, %v794, 0.0
        %v822 = vrot.slane %v821, 4
        %v823 = vadd.f32 %v821, %v822
        %v824 = vrot.slane %v823, 2
        %v825 = vadd.f32 %v823, %v824
        %v826 = vrot.slane %v825, 1
        %v827 = vadd.f32 %v825, %v826
        %v828 = vsel %vm799, %v795, 0.0
        %v829 = vrot.slane %v828, 4
        %v830 = vadd.f32 %v828, %v829
        %v831 = vrot.slane %v830, 2
        %v832 = vadd.f32 %v830, %v831
        %v833 = vrot.slane %v832, 1
        %v834 = vadd.f32 %v832, %v833
        %v835 = vsel %vm799, %v796, 0.0
        %v836 = vrot.slane %v835, 4
        %v837 = vadd.f32 %v835, %v836
        %v838 = vrot.slane %v837, 2
        %v839 = vadd.f32 %v837, %v838
        %v840 = vrot.slane %v839, 1
        %v841 = vadd.f32 %v839, %v840
        %v842 = vsel %vm799, %v797, 0.0
        %v843 = vrot.slane %v842, 4
        %v844 = vadd.f32 %v842, %v843
        %v845 = vrot.slane %v844, 2
        %v846 = vadd.f32 %v844, %v845
        %v847 = vrot.slane %v846, 1
        %v848 = vadd.f32 %v846, %v847
        %v849 = vsel %vm799, %v798, 0.0
        %v850 = vrot.slane %v849, 4
        %v851 = vadd.f32 %v849, %v850
        %v852 = vrot.slane %v851, 2
        %v853 = vadd.f32 %v851, %v852
        %v854 = vrot.slane %v853, 1
        %v855 = vadd.f32 %v853, %v854
        %v864 = vsel %vm768, %v813, %v806
        %v865 = vsel %vm770, %v820, %v864
        %v866 = vsel %vm772, %v827, %v865
        %v867 = vsel %vm774, %v834, %v866
        %v868 = vsel %vm776, %v841, %v867
        %v869 = vsel %vm778, %v848, %v868
        %v870 = vsel %vm780, %v855, %v869
        %872 = vst.msk [vmem:[%s297] sm:$0xff] %vm799, %v870
        %s873 = sand.u32 %s144, 1
        %s874 = scalar_lea.sflag [#allocation5], %s873
        %s875 = sand.u32 %s144, 1
        %s876 = smul.addr %s875, 8
        %s877 = scalar_lea.vmem [#allocation8], %s876
        %p878 = scmp.lt.s32.totalorder %s26, 1
        %s879 = scalar_select %p878, %s26, 1
        %s880 = smul.addr %s879, 8
        %s881 = scalar_lea.vmem %s6, %s880
        // Predicated region
        $region49: #{tpu_custom_call.1} parent=39 // pred_check
          %p882 = pneg %p154
        $region50: #{tpu_custom_call.1} parent=39 // pred_check_branch
          %884 = sbr.rel (%p882) target = $region52
        $region51: #{tpu_custom_call.1} parent=39 // pred_region
          %s886 = ssub.s32 128, 128
          %887 = vsyncadd %s874, %s886
          %s888 = smul.addr %s26, 128
          %s889 = scalar_lea.hbm %s5, %s888
          %s891 = sshll.u32 %s877, 4
          %s892 = int_to_ptr.vmem [resolvable:$true] %s891
          %894 = dma.vmem_to_hbm [thread:$0]  %s892, 128, %s889, %s874
        $region52: #{tpu_custom_call.1} parent=39 // pred_fallthru
          _
        // Predicated region
        $region53: #{tpu_custom_call.1} parent=39 // pred_check
          %p895 = pneg %p180
        $region54: #{tpu_custom_call.1} parent=39 // pred_check_branch
          %897 = sbr.rel (%p895) target = $region56
        $region55: #{tpu_custom_call.1} parent=39 // pred_region
          _
        $region56: #{tpu_custom_call.1} parent=39 // pred_fallthru
          _
      $region40: #{tpu_custom_call.1} parent=5 // pred_fallthru
        _
      %p898 = scmp.le.s32.totalorder 2, %s21
      // Predicated region
      $region57: #{tpu_custom_call.1} parent=5 // pred_check
        %p899 = pneg %p898
      $region58: #{tpu_custom_call.1} parent=5 // pred_check_branch
        %901 = sbr.rel (%p899) target = $region60
      $region59: #{tpu_custom_call.1} parent=5 // pred_region
        %s902 = ssub.s32 %s21, 2
        // Predicated region
        $region61: #{tpu_custom_call.1} parent=59 // pred_check
          %p903 = pneg %p160
        $region62: #{tpu_custom_call.1} parent=59 // pred_check_branch
          %905 = sbr.rel (%p903) target = $region64
        $region63: #{tpu_custom_call.1} parent=59 // pred_region
          %s906 = sand.u32 %s145, 1
          %s907 = scalar_lea.sflag [#allocation5], %s906
          %s908 = sand.u32 %s145, 1
          %s909 = smul.addr %s908, 8
          %s910 = scalar_lea.vmem [#allocation8], %s909
          %911 = dma.done %s907, 128
        $region64: #{tpu_custom_call.1} parent=59 // pred_fallthru
          _
        // Predicated region
        $region65: #{tpu_custom_call.1} parent=59 // pred_check
          %p912 = pneg %p186
        $region66: #{tpu_custom_call.1} parent=59 // pred_check_branch
          %914 = sbr.rel (%p912) target = $region68
        $region67: #{tpu_custom_call.1} parent=59 // pred_region
          %p915 = scmp.lt.s32.totalorder %s27, 1
          %s916 = scalar_select %p915, %s27, 1
          %s917 = smul.addr %s916, 8
          %s918 = scalar_lea.vmem %s6, %s917
        $region68: #{tpu_custom_call.1} parent=59 // pred_fallthru
          _
      $region60: #{tpu_custom_call.1} parent=5 // pred_fallthru
        _
    $region6: #{tpu_custom_call.1} parent=1 // loop_footer
      %s25 = sadd.s32 1, %s21
    $region7: #{tpu_custom_call.1} parent=1 // loop_footer_branch
      %20 = sbr.rel target = $region3
    $region8: #{tpu_custom_call.1} parent=1 // loop_exit
      _
    %919 = vsyncpa [#allocation4], 1
    %s920 = scalar_lea.sflag [#allocation4], 1
    %921 = vsyncpa %s920, 1
    %922 = vsyncpa [#allocation7], 1
    %923 = vsyncpa [#allocation5], 1
    %s924 = scalar_lea.sflag [#allocation5], 1
    %925 = vsyncpa %s924, 1

</llo_original>
